<compile_context>
chip_gen: v5e
topology: v5e:2x2
jax: 0.10.0
libtpu: 0.0.40
codegen_flags: <defaults>
</compile_context>

<pallas_src>
import functools
import math

import jax
import jax.numpy as jnp
from jax import lax
from jax.experimental import pallas as pl
from jax.experimental.pallas import tpu as pltpu

_U_EPS = 1e-6  # keep u away from exact 0/1 so log(u), log1p(-u) are finite


# ----------------------------- kernels ---------------------------------------


def _l0_eval_kernel(x_ref, w_ref, la_ref, b_ref, o_ref, acc_ref, *,
                    gamma, zeta, add_bias, compute_dtype):
    k = pl.program_id(1)

    @pl.when(k == 0)
    def _init():
        acc_ref[...] = jnp.zeros_like(acc_ref)

    # Deterministic (eval-mode) hard-concrete gates:
    #   gates = clamp(sigmoid(log_alpha) * (zeta - gamma) + gamma, 0, 1)
    gates = jnp.clip(jax.nn.sigmoid(la_ref[...]) * (zeta - gamma) + gamma,
                     0.0, 1.0)
    w = w_ref[...] * gates                    # [tn, tk] masked weight tile
    xt = x_ref[...]                           # [B, tk]
    if compute_dtype is not None:
        w = w.astype(compute_dtype)
        xt = xt.astype(compute_dtype)
    # x[B,tk] . w[tn,tk], contracting on the stored K axis (no transpose).
    acc_ref[...] += lax.dot_general(
        xt, w, dimension_numbers=(((1,), (1,)), ((), ())),
        preferred_element_type=jnp.float32)

    @pl.when(k == pl.num_programs(1) - 1)
    def _finalize():
        out = acc_ref[...]
        if add_bias:
            out = out + b_ref[...]
        o_ref[...] = out.astype(o_ref.dtype)


def _l0_train_kernel(x_ref, w_ref, la_ref, u_ref, b_ref, o_ref, acc_ref, *,
                     gamma, zeta, beta, add_bias, compute_dtype):
    k = pl.program_id(1)

    @pl.when(k == 0)
    def _init():
        acc_ref[...] = jnp.zeros_like(acc_ref)

    # Stochastic (training-mode) hard-concrete gates, u streamed per tile:
    #   s = sigmoid((log(u) - log(1 - u) + log_alpha) / beta)
    u = u_ref[...]
    s = jax.nn.sigmoid((jnp.log(u) - jnp.log1p(-u) + la_ref[...]) * (1.0 / beta))
    gates = jnp.clip(s * (zeta - gamma) + gamma, 0.0, 1.0)
    w = w_ref[...] * gates
    xt = x_ref[...]
    if compute_dtype is not None:
        w = w.astype(compute_dtype)
        xt = xt.astype(compute_dtype)
    acc_ref[...] += lax.dot_general(
        xt, w, dimension_numbers=(((1,), (1,)), ((), ())),
        preferred_element_type=jnp.float32)

    @pl.when(k == pl.num_programs(1) - 1)
    def _finalize():
        out = acc_ref[...]
        if add_bias:
            out = out + b_ref[...]
        o_ref[...] = out.astype(o_ref.dtype)


# ----------------------------- wrapper ----------------------------------------


def _pick_tile(dim, candidates, align):
    """Largest candidate that evenly divides `dim` and is `align`-aligned."""
    for c in candidates:
        if c <= dim and dim % c == 0 and c % align == 0:
            return c
    return dim  # fall back to the full dimension (always legal)


def l0_linear_forward(x, weight, log_alpha, bias, *, gamma, zeta, beta,
                      training=False, rng_key=None, tn=None, tk=None,
                      compute_dtype=None):
    """Pallas implementation of L0Linear.forward.

    x:         [B, in_features]   float32
    weight:    [out, in]          float32  (PyTorch F.linear convention)
    log_alpha: [out, in]          float32
    bias:      [out] or None      float32
    returns:   [B, out]           float32

    compute_dtype: optionally cast matmul operands (e.g. jnp.bfloat16) for the
    bf16-native MXU on v6e/v7x; gate math and accumulation stay f32.
    """
    B, in_f = x.shape
    out_f = weight.shape[0]

    tn = tn if tn is not None else _pick_tile(out_f, (512, 256, 128), 128)
    tk = tk if tk is not None else _pick_tile(in_f, (1024, 512, 256, 128), 128)
    assert out_f % tn == 0, f"out_features {out_f} not divisible by tn={tn}"
    assert in_f % tk == 0, f"in_features {in_f} not divisible by tk={tk}"
    n_blocks, k_blocks = out_f // tn, in_f // tk

    add_bias = bias is not None
    if add_bias:
        bias_2d = bias.reshape(1, out_f).astype(x.dtype)
    else:
        # Tiny placeholder (never read at trace time; only a (1, tn) DMA).
        bias_2d = jnp.zeros((1, out_f), dtype=x.dtype)

    # BlockSpecs: grid = (n, k); K is the (trailing) reduction axis.
    x_spec = pl.BlockSpec((B, tk), lambda n, k: (0, k))
    w_spec = pl.BlockSpec((tn, tk), lambda n, k: (n, k))
    la_spec = pl.BlockSpec((tn, tk), lambda n, k: (n, k))
    b_spec = pl.BlockSpec((1, tn), lambda n, k: (0, n))
    o_spec = pl.BlockSpec((B, tn), lambda n, k: (0, n))

    n_streamed_tiles = 4 if training else 3  # x, w, log_alpha (+ u)
    itemsize = 4
    tile_bytes = (2 * (B * tk + 2 * tn * tk + (tn * tk if training else 0) + tn)
                  * itemsize                      # double-buffered inputs
                  + 2 * B * tn * itemsize         # double-buffered output
                  + B * tn * 4)                   # accumulator scratch
    vmem_limit = int(min(max(2 * tile_bytes + (1 << 20), 16 << 20), 32 << 20))

    cost = pl.CostEstimate(
        flops=2 * B * out_f * in_f + 3 * out_f * in_f,
        transcendentals=out_f * in_f * (3 if training else 1),
        bytes_accessed=itemsize * (B * in_f + n_streamed_tiles * out_f * in_f
                                   - B * in_f + out_f + B * out_f
                                   + out_f * in_f * (2 if not training else 3)),
    )

    params = pltpu.CompilerParams(
        dimension_semantics=("parallel", "arbitrary"),
        vmem_limit_bytes=vmem_limit,
    )
    out_shape = jax.ShapeDtypeStruct((B, out_f), x.dtype)
    scratch = [pltpu.VMEM((B, tn), jnp.float32)]

    if not training:
        kernel = functools.partial(_l0_eval_kernel, gamma=gamma, zeta=zeta,
                                   add_bias=add_bias, compute_dtype=compute_dtype)
        return pl.pallas_call(
            kernel,
            out_shape=out_shape,
            grid=(n_blocks, k_blocks),
            in_specs=[x_spec, w_spec, la_spec, b_spec],
            out_specs=o_spec,
            scratch_shapes=scratch,
            compiler_params=params,
            cost_estimate=cost,
        )(x, weight, log_alpha, bias_2d)

    # Training mode: sample the hard-concrete noise with jax.random in the
    # wrapper and stream it per tile (independent noise per weight tile).
    # TODO(synk): the random stream differs from torch.rand_like; only the
    # hard-concrete sampling formula is reproduced, not the exact draws.
    if rng_key is None:
        rng_key = jax.random.PRNGKey(0)
    u = jax.random.uniform(rng_key, log_alpha.shape, x.dtype,
                           minval=_U_EPS, maxval=1.0 - _U_EPS)
    kernel = functools.partial(_l0_train_kernel, gamma=gamma, zeta=zeta,
                               beta=beta, add_bias=add_bias,
                               compute_dtype=compute_dtype)
    return pl.pallas_call(
        kernel,
        out_shape=out_shape,
        grid=(n_blocks, k_blocks),
        in_specs=[x_spec, w_spec, la_spec, la_spec, b_spec],
        out_specs=o_spec,
        scratch_shapes=scratch,
        compiler_params=params,
        cost_estimate=cost,
    )(x, weight, log_alpha, u, bias_2d)


# ----------------------------- parameter init ---------------------------------


def init_l0_linear_params(key, in_features, out_features):
    """Init matching L0Linear.__init__/reset_parameters shapes & distributions.

    kaiming_uniform_(a=sqrt(5)) on a [out, in] weight reduces to
    U(-1/sqrt(fan_in), 1/sqrt(fan_in)); bias uses the same bound;
    log_alpha ~ 0.01 * N(0, 1).
    """
    kw, kb, ka = jax.random.split(key, 3)
    bound = 1.0 / math.sqrt(in_features)
    weight = jax.random.uniform(kw, (out_features, in_features),
                                jnp.float32, -bound, bound)
    bias = jax.random.uniform(kb, (out_features,), jnp.float32, -bound, bound)
    log_alpha = 0.01 * jax.random.normal(ka, (out_features, in_features),
                                         jnp.float32)
    return weight, bias, log_alpha


# ----------------------------- demo / check ------------------------------------


if __name__ == "__main__":
    B, IN_F, OUT_F = 8, 512, 256
    gamma, zeta, beta = -0.1, 1.1, 2.0 / 3.0

    key = jax.random.PRNGKey(0)
    kx, kp, ku = jax.random.split(key, 3)
    x = jax.random.normal(kx, (B, IN_F), jnp.float32)
    weight, bias, log_alpha = init_l0_linear_params(kp, IN_F, OUT_F)

    # ---- eval path (deterministic gates), grid = (2 N-tiles, 2 K-tiles) ------
    y = l0_linear_forward(x, weight, log_alpha, bias,
                          gamma=gamma, zeta=zeta, beta=beta,
                          training=False, tn=128, tk=256)
    y = jax.block_until_ready(y)
    gates_ref = jnp.clip(jax.nn.sigmoid(log_alpha) * (zeta - gamma) + gamma,
                         0.0, 1.0)
    y_ref = x @ (weight * gates_ref).T + bias[None, :]
    assert y.shape == (B, OUT_F)
    # loose tolerance covers MXU bf16-pass matmul precision on real TPUs
    assert jnp.allclose(y, y_ref, atol=2e-2, rtol=2e-2), "eval-mode mismatch"

    # ---- training path (stochastic hard-concrete gates) ----------------------
    y_tr = l0_linear_forward(x, weight, log_alpha, bias,
                             gamma=gamma, zeta=zeta, beta=beta,
                             training=True, rng_key=ku, tn=128, tk=256)
    y_tr = jax.block_until_ready(y_tr)
    u_same = jax.random.uniform(ku, log_alpha.shape, jnp.float32,
                                minval=_U_EPS, maxval=1.0 - _U_EPS)
    s_ref = jax.nn.sigmoid((jnp.log(u_same) - jnp.log1p(-u_same) + log_alpha) / beta)
    gates_tr = jnp.clip(s_ref * (zeta - gamma) + gamma, 0.0, 1.0)
    y_tr_ref = x @ (weight * gates_tr).T + bias[None, :]
    assert jnp.allclose(y_tr, y_tr_ref, atol=2e-2, rtol=2e-2), "train-mode mismatch"

    # ---- bf16 matmul operands (v6e/v7x MXU-native); gate math stays f32 ------
    y_bf16 = l0_linear_forward(x, weight, log_alpha, bias,
                               gamma=gamma, zeta=zeta, beta=beta,
                               training=False, tn=128, tk=256,
                               compute_dtype=jnp.bfloat16)
    y_bf16 = jax.block_until_ready(y_bf16)
    assert jnp.all(jnp.isfinite(y_bf16))
    assert jnp.allclose(y_bf16, y_ref, atol=1e-1, rtol=1e-1), "bf16 path diverged"

    print("KERNEL_OK")
</pallas_src>

<mosaic_0001>
module attributes {stable_mosaic.version = 11 : i64} {
  func.func @_l0_eval_kernel(%arg0: i32, %arg1: i32, %arg2: memref<8x256xf32, #tpu.memory_space<vmem>>, %arg3: memref<128x256xf32, #tpu.memory_space<vmem>>, %arg4: memref<128x256xf32, #tpu.memory_space<vmem>>, %arg5: memref<1x128xf32, #tpu.memory_space<vmem>>, %arg6: memref<8x128xf32, #tpu.memory_space<vmem>>, %arg7: memref<8x128xf32, #tpu.memory_space<vmem>>) attributes {dimension_semantics = [#tpu.dimension_semantics<parallel>, #tpu.dimension_semantics<arbitrary>], iteration_bounds = array<i64: 2, 2>, scalar_prefetch = 0 : i64, scratch_operands = 1 : i64, tpu.core_type = #tpu.core_type<tc>, window_params = [{transform_indices = @transform_0, window_bounds = array<i64: 8, 256>}, {transform_indices = @transform_1, window_bounds = array<i64: 128, 256>}, {transform_indices = @transform_2, window_bounds = array<i64: 128, 256>}, {transform_indices = @transform_3, window_bounds = array<i64: 1, 128>}, {transform_indices = @transform_4, window_bounds = array<i64: 8, 128>}]} {
    %c0_i32 = arith.constant 0 : i32
    %0 = arith.cmpi eq, %arg1, %c0_i32 : i32
    %1 = arith.extui %0 : i1 to i32
    %c0_i32_0 = arith.constant 0 : i32
    %2 = arith.cmpi ne, %1, %c0_i32_0 : i32
    scf.if %2 {
      %cst_16 = arith.constant 0.000000e+00 : f32
      %27 = vector.broadcast %cst_16 : f32 to vector<8x128xf32>
      %c0_17 = arith.constant 0 : index
      %c0_18 = arith.constant 0 : index
      %28 = vector.load %arg7[%c0_17, %c0_18] : memref<8x128xf32, #tpu.memory_space<vmem>>, vector<8x128xf32>
      tpu.vector_store %arg7[%c0_17, %c0_18], %27 {strides = array<i32>} : memref<8x128xf32, #tpu.memory_space<vmem>>, vector<8x128xf32>,
    } else {
    }
    %c0 = arith.constant 0 : index
    %c0_1 = arith.constant 0 : index
    %3 = vector.load %arg4[%c0, %c0_1] : memref<128x256xf32, #tpu.memory_space<vmem>>, vector<128x256xf32>
    %4 = arith.negf %3 : vector<128x256xf32>
    %5 = math.exp %4 : vector<128x256xf32>
    %cst = arith.constant 1.000000e+00 : f32
    %6 = vector.broadcast %cst : f32 to vector<128x256xf32>
    %7 = arith.addf %6, %5 : vector<128x256xf32>
    %8 = arith.divf %6, %7 : vector<128x256xf32>
    %cst_2 = arith.constant 1.200000e+00 : f32
    %9 = vector.broadcast %cst_2 : f32 to vector<128x256xf32>
    %10 = arith.mulf %8, %9 : vector<128x256xf32>
    %cst_3 = arith.constant -1.000000e-01 : f32
    %11 = vector.broadcast %cst_3 : f32 to vector<128x256xf32>
    %12 = arith.addf %10, %11 : vector<128x256xf32>
    %cst_4 = arith.constant 0.000000e+00 : f32
    %cst_5 = arith.constant 1.000000e+00 : f32
    %13 = vector.broadcast %cst_4 : f32 to vector<128x256xf32>
    %14 = arith.maximumf %13, %12 : vector<128x256xf32>
    %15 = vector.broadcast %cst_5 : f32 to vector<128x256xf32>
    %16 = arith.minimumf %15, %14 : vector<128x256xf32>
    %c0_6 = arith.constant 0 : index
    %c0_7 = arith.constant 0 : index
    %17 = vector.load %arg3[%c0_6, %c0_7] : memref<128x256xf32, #tpu.memory_space<vmem>>, vector<128x256xf32>
    %18 = arith.mulf %17, %16 : vector<128x256xf32>
    %c0_8 = arith.constant 0 : index
    %c0_9 = arith.constant 0 : index
    %19 = vector.load %arg2[%c0_8, %c0_9] : memref<8x256xf32, #tpu.memory_space<vmem>>, vector<8x256xf32>
    %c0_10 = arith.constant 0 : index
    %c0_11 = arith.constant 0 : index
    %20 = vector.load %arg7[%c0_10, %c0_11] : memref<8x128xf32, #tpu.memory_space<vmem>>, vector<8x128xf32>
    %cst_12 = arith.constant dense<0.000000e+00> : vector<8x128xf32>
    %21 = tpu.matmul %19, %18, %cst_12 {dimension_numbers = #tpu.dot_dimension_numbers<[1], [1], [0], [0], [0, 0, 1, 0], [], []>} : vector<8x256xf32>, vector<128x256xf32>, vector<8x128xf32> -> vector<8x128xf32>
    %22 = arith.addf %20, %21 : vector<8x128xf32>
    %c0_13 = arith.constant 0 : index
    %c0_14 = arith.constant 0 : index
    %23 = vector.load %arg7[%c0_13, %c0_14] : memref<8x128xf32, #tpu.memory_space<vmem>>, vector<8x128xf32>
    tpu.vector_store %arg7[%c0_13, %c0_14], %22 {strides = array<i32>} : memref<8x128xf32, #tpu.memory_space<vmem>>, vector<8x128xf32>,
    %c1_i32 = arith.constant 1 : i32
    %24 = arith.cmpi eq, %arg1, %c1_i32 : i32
    %25 = arith.extui %24 : i1 to i32
    %c0_i32_15 = arith.constant 0 : i32
    %26 = arith.cmpi ne, %25, %c0_i32_15 : i32
    scf.if %26 {
      %c0_16 = arith.constant 0 : index
      %c0_17 = arith.constant 0 : index
      %27 = vector.load %arg7[%c0_16, %c0_17] : memref<8x128xf32, #tpu.memory_space<vmem>>, vector<8x128xf32>
      %c0_18 = arith.constant 0 : index
      %c0_19 = arith.constant 0 : index
      %28 = vector.load %arg5[%c0_18, %c0_19] : memref<1x128xf32, #tpu.memory_space<vmem>>, vector<1x128xf32>
      %29 = vector.broadcast %28 : vector<1x128xf32> to vector<8x128xf32>
      %30 = arith.addf %27, %29 : vector<8x128xf32>
      %c0_20 = arith.constant 0 : index
      %c0_21 = arith.constant 0 : index
      %31 = vector.load %arg6[%c0_20, %c0_21] : memref<8x128xf32, #tpu.memory_space<vmem>>, vector<8x128xf32>
      tpu.vector_store %arg6[%c0_20, %c0_21], %30 {strides = array<i32>} : memref<8x128xf32, #tpu.memory_space<vmem>>, vector<8x128xf32>,
    } else {
    }
    return
  }
  func.func @transform_0(%arg0: i32, %arg1: i32) -> (i32, i32) {
    %c0_i32 = arith.constant 0 : i32
    %c0_i32_0 = arith.constant 0 : i32
    return %c0_i32, %arg1 : i32, i32
  }
  func.func @transform_1(%arg0: i32, %arg1: i32) -> (i32, i32) {
    %c0_i32 = arith.constant 0 : i32
    return %arg0, %arg1 : i32, i32
  }
  func.func @transform_2(%arg0: i32, %arg1: i32) -> (i32, i32) {
    %c0_i32 = arith.constant 0 : i32
    return %arg0, %arg1 : i32, i32
  }
  func.func @transform_3(%arg0: i32, %arg1: i32) -> (i32, i32) {
    %c0_i32 = arith.constant 0 : i32
    %c0_i32_0 = arith.constant 0 : i32
    return %c0_i32, %arg0 : i32, i32
  }
  func.func @transform_4(%arg0: i32, %arg1: i32) -> (i32, i32) {
    %c0_i32 = arith.constant 0 : i32
    %c0_i32_0 = arith.constant 0 : i32
    return %c0_i32, %arg0 : i32, i32
  }
}

</mosaic_0001>

<llo_original>
// kernel: tpu_custom_call.1
$region0: #{tpu_custom_call.1}
  #allocation0 [shape = 'u32[]', space=smem, size = 0x4, offset = 0x4, fixed_abs, tag = 'smem constant byte address 0x4 - core index']
  #allocation1 [shape = 'u32[72,128]{1,0:T(1,128)}', space=vmem, size = 0x9000, scoped, tag = 'internal scratch']
  #allocation2 [shape = 'f32[8,128]{1,0:T(8,128)}', space=vmem, size = 0x1000, scoped, tag = 'scratch operand']
  %s0 = inlined_call_operand.hbm [shape: f32[8,512], index: 0, kind: input, shape index: {}]
  %s1 = inlined_call_operand.hbm [shape: f32[256,512], index: 1, kind: input, shape index: {}]
  %s2 = inlined_call_operand.hbm [shape: f32[256,512], index: 2, kind: input, shape index: {}]
  %s3 = inlined_call_operand.vmem [shape: f32[1,256], index: 3, kind: input, shape index: {}]
  %s4 = inlined_call_operand.hbm [shape: f32[8,256], index: 4, kind: output, shape index: {}]
  %s5 = sld [smem:[#allocation0]]
  $region69: #{tpu_custom_call.1} parent=0
    _
  %s7 = ssub.s32 1, %s5
  %s8 = scalar_select 0, %s7, %s5
  $region1: #{tpu_custom_call.1} parent=0
    #allocation3 [shape = 'u8[16384]{0}', space=vmem, size = 0x4000, scoped, tag = 'input window, operand 0']
    #allocation4 [shape = 's32[2]{0}', space=sflag, size = 0x8, scoped, tag = 'scoped memory for tpu_custom_call.1']
    #allocation5 [shape = 's32[2]{0}', space=sflag, size = 0x8, scoped, tag = 'scoped memory for tpu_custom_call.1']
    #allocation6 [shape = 'u8[262144]{0}', space=vmem, size = 0x40000, scoped, tag = 'input window, operand 1']
    #allocation7 [shape = 's32[2]{0}', space=sflag, size = 0x8, scoped, tag = 'scoped memory for tpu_custom_call.1']
    #allocation8 [shape = 'u8[262144]{0}', space=vmem, size = 0x40000, scoped, tag = 'input window, operand 2']
    #allocation9 [shape = 'u8[8192]{0}', space=vmem, size = 0x2000, scoped, tag = 'output window, operand 0']
    %9 = vsyncpa [#allocation4], 0
    %s10 = scalar_lea.sflag [#allocation4], 1
    %11 = vsyncpa %s10, 0
    %12 = vsyncpa [#allocation7], 0
    %s13 = scalar_lea.sflag [#allocation7], 1
    %14 = vsyncpa %s13, 0
    %15 = vsyncpa [#allocation5], 0
    %s16 = scalar_lea.sflag [#allocation5], 1
    %17 = vsyncpa %s16, 0
    loop: start=0, step=1, limit=6
    $region2: #{tpu_custom_call.1} parent=1 // loop_pre_header
      _
    $region3: #{tpu_custom_call.1} parent=1 // loop_header
      %s19 = sphi 0, %s23
      %p20 = scmp.ge.s32.totalorder %s19, 6
      %s26 = sphi 0, %s38
      %s27 = sphi 0, %s34
      %s28 = sphi 0, %s26
      %s29 = sphi 0, %s27
      %s30 = sphi 0, %s28
      %s31 = sphi 0, %s29
      %s41 = sphi 0, %s43
      %s44 = sphi 0, %s41
      %s45 = sphi 0, %s44
      %s61 = sphi 0, %s45
      %s69 = sphi 0, %s71
      %s72 = sphi 0, %s69
      %s73 = sphi 0, %s72
      %s89 = sphi 0, %s73
      %s97 = sphi 0, %s99
      %s100 = sphi 0, %s97
      %s101 = sphi 0, %s100
      %s117 = sphi 0, %s101
      %s123 = sphi 0, %s125
      %s126 = sphi 0, %s123
      %s127 = sphi 0, %s126
      %s143 = sphi 0, %s127
      %s149 = sphi 0, %s151
      %s152 = sphi 0, %s149
      %s153 = sphi 0, %s152
      %s169 = sphi 0, %s153
    $region4: #{tpu_custom_call.1} parent=1 // loop_header_branch
      %22 = sbr.rel (%p20) target = $region8
    $region5: #{tpu_custom_call.1} parent=1 // loop_body
      %s24 = ssub.s32 %s19, 1
      %s25 = ssub.s32 %s19, 2
      %s32 = sadd.s32 1, %s27
      %p33 = scmp.ge.s32.totalorder %s32, 2
      %s34 = scalar_select %p33, 0, %s32
      %s35 = sadd.s32 1, %s26
      %s36 = scalar_select %p33, %s35, %s26
      %p37 = scmp.ge.s32.totalorder %s36, 2
      %s38 = scalar_select %p37, 0, %s36
      %s39 = ssub.s32 %s27, %s34
      %p40 = scmp.eq.s32.totalorder %s39, 0
      %s42 = sadd.s32 %s41, 1
      %s43 = scalar_select %p40, %s41, %s42
      %p46 = pneg %p40
      %p47 = scmp.eq.s32.totalorder %s19, 3
      %p48 = por %p46, %p47
      %p49 = scmp.ne.s32.totalorder %s41, %s44
      %p50 = scmp.eq.s32.totalorder %s19, 0
      %p51 = por %p49, %p50
      %p52 = scmp.ne.s32.totalorder %s41, %s44
      %p53 = scmp.eq.s32.totalorder %s24, 3
      %p54 = por %p52, %p53
      %p55 = scmp.ne.s32.totalorder %s44, %s45
      %p56 = scmp.eq.s32.totalorder %s24, 0
      %p57 = por %p55, %p56
      %p58 = scmp.ne.s32.totalorder %s44, %s45
      %p59 = scmp.eq.s32.totalorder %s25, 3
      %p60 = por %p58, %p59
      %p62 = scmp.ne.s32.totalorder %s45, %s61
      %p63 = scmp.eq.s32.totalorder %s25, 0
      %p64 = por %p62, %p63
      %s65 = ssub.s32 %s26, %s38
      %s66 = ssub.s32 %s27, %s34
      %s67 = sor.u32 %s65, %s66
      %p68 = scmp.eq.s32.totalorder %s67, 0
      %s70 = sadd.s32 %s69, 1
      %s71 = scalar_select %p68, %s69, %s70
      %p74 = pneg %p68
      %p75 = scmp.eq.s32.totalorder %s19, 3
      %p76 = por %p74, %p75
      %p77 = scmp.ne.s32.totalorder %s69, %s72
      %p78 = scmp.eq.s32.totalorder %s19, 0
      %p79 = por %p77, %p78
      %p80 = scmp.ne.s32.totalorder %s69, %s72
      %p81 = scmp.eq.s32.totalorder %s24, 3
      %p82 = por %p80, %p81
      %p83 = scmp.ne.s32.totalorder %s72, %s73
      %p84 = scmp.eq.s32.totalorder %s24, 0
      %p85 = por %p83, %p84
      %p86 = scmp.ne.s32.totalorder %s72, %s73
      %p87 = scmp.eq.s32.totalorder %s25, 3
      %p88 = por %p86, %p87
      %p90 = scmp.ne.s32.totalorder %s73, %s89
      %p91 = scmp.eq.s32.totalorder %s25, 0
      %p92 = por %p90, %p91
      %s93 = ssub.s32 %s26, %s38
      %s94 = ssub.s32 %s27, %s34
      %s95 = sor.u32 %s93, %s94
      %p96 = scmp.eq.s32.totalorder %s95, 0
      %s98 = sadd.s32 %s97, 1
      %s99 = scalar_select %p96, %s97, %s98
      %p102 = pneg %p96
      %p103 = scmp.eq.s32.totalorder %s19, 3
      %p104 = por %p102, %p103
      %p105 = scmp.ne.s32.totalorder %s97, %s100
      %p106 = scmp.eq.s32.totalorder %s19, 0
      %p107 = por %p105, %p106
      %p108 = scmp.ne.s32.totalorder %s97, %s100
      %p109 = scmp.eq.s32.totalorder %s24, 3
      %p110 = por %p108, %p109
      %p111 = scmp.ne.s32.totalorder %s100, %s101
      %p112 = scmp.eq.s32.totalorder %s24, 0
      %p113 = por %p111, %p112
      %p114 = scmp.ne.s32.totalorder %s100, %s101
      %p115 = scmp.eq.s32.totalorder %s25, 3
      %p116 = por %p114, %p115
      %p118 = scmp.ne.s32.totalorder %s101, %s117
      %p119 = scmp.eq.s32.totalorder %s25, 0
      %p120 = por %p118, %p119
      %s121 = ssub.s32 %s26, %s38
      %p122 = scmp.eq.s32.totalorder %s121, 0
      %s124 = sadd.s32 %s123, 1
      %s125 = scalar_select %p122, %s123, %s124
      %p128 = pneg %p122
      %p129 = scmp.eq.s32.totalorder %s19, 3
      %p130 = por %p128, %p129
      %p131 = scmp.ne.s32.totalorder %s123, %s126
      %p132 = scmp.eq.s32.totalorder %s19, 0
      %p133 = por %p131, %p132
      %p134 = scmp.ne.s32.totalorder %s123, %s126
      %p135 = scmp.eq.s32.totalorder %s24, 3
      %p136 = por %p134, %p135
      %p137 = scmp.ne.s32.totalorder %s126, %s127
      %p138 = scmp.eq.s32.totalorder %s24, 0
      %p139 = por %p137, %p138
      %p140 = scmp.ne.s32.totalorder %s126, %s127
      %p141 = scmp.eq.s32.totalorder %s25, 3
      %p142 = por %p140, %p141
      %p144 = scmp.ne.s32.totalorder %s127, %s143
      %p145 = scmp.eq.s32.totalorder %s25, 0
      %p146 = por %p144, %p145
      %s147 = ssub.s32 %s26, %s38
      %p148 = scmp.eq.s32.totalorder %s147, 0
      %s150 = sadd.s32 %s149, 1
      %s151 = scalar_select %p148, %s149, %s150
      %p154 = pneg %p148
      %p155 = scmp.eq.s32.totalorder %s19, 3
      %p156 = por %p154, %p155
      %p157 = scmp.ne.s32.totalorder %s149, %s152
      %p158 = scmp.eq.s32.totalorder %s19, 0
      %p159 = por %p157, %p158
      %p160 = scmp.ne.s32.totalorder %s149, %s152
      %p161 = scmp.eq.s32.totalorder %s24, 3
      %p162 = por %p160, %p161
      %p163 = scmp.ne.s32.totalorder %s152, %s153
      %p164 = scmp.eq.s32.totalorder %s24, 0
      %p165 = por %p163, %p164
      %p166 = scmp.ne.s32.totalorder %s152, %s153
      %p167 = scmp.eq.s32.totalorder %s25, 3
      %p168 = por %p166, %p167
      %p170 = scmp.ne.s32.totalorder %s153, %s169
      %p171 = scmp.eq.s32.totalorder %s25, 0
      %p172 = por %p170, %p171
      %p173 = scmp.le.s32.totalorder 1, %s19
      %p174 = scmp.lt.s32.totalorder %s19, 5
      %p175 = pnand %p173, %p174
      %p176 = pneg %p175
      // Predicated region
      $region9: #{tpu_custom_call.1} parent=5 // pred_check
        _
      $region10: #{tpu_custom_call.1} parent=5 // pred_check_branch
        %178 = sbr.rel (%p175) target = $region12
      $region11: #{tpu_custom_call.1} parent=5 // pred_region
        %s179 = ssub.s32 %s19, 1
      $region12: #{tpu_custom_call.1} parent=5 // pred_fallthru
        _
      %p180 = scmp.lt.s32.totalorder %s19, 4
      // Predicated region
      $region13: #{tpu_custom_call.1} parent=5 // pred_check
        %p181 = pneg %p180
      $region14: #{tpu_custom_call.1} parent=5 // pred_check_branch
        %183 = sbr.rel (%p181) target = $region16
      $region15: #{tpu_custom_call.1} parent=5 // pred_region
        // Predicated region
        $region17: #{tpu_custom_call.1} parent=15 // pred_check
          %p184 = pneg %p51
        $region18: #{tpu_custom_call.1} parent=15 // pred_check_branch
          %186 = sbr.rel (%p184) target = $region20
        $region19: #{tpu_custom_call.1} parent=15 // pred_region
          %s187 = sand.u32 %s41, 1
          %s188 = scalar_lea.sflag [#allocation4], %s187
          %s189 = sand.u32 %s41, 1
          %s190 = smul.addr %s189, 16
          %s191 = scalar_lea.vmem [#allocation3], %s190
          %s192 = smul.u32 2, %s27
          %194 = vsyncadd %s188, 0
          %s195 = smul.addr %s192, 8
          %s196 = scalar_lea.hbm %s0, %s195
          %s198 = sshll.u32 %s196, 4
          %s199 = int_to_ptr.hbm [resolvable:$true] %s198
          %s200 = sshll.u32 %s191, 4
          %s201 = int_to_ptr.vmem [resolvable:$true] %s200
          %203 = dma.hbm_to_vmem [thread:$0]  %s199, 256, %s201, %s188
        $region20: #{tpu_custom_call.1} parent=15 // pred_fallthru
          _
        // Predicated region
        $region21: #{tpu_custom_call.1} parent=15 // pred_check
          %p204 = pneg %p79
        $region22: #{tpu_custom_call.1} parent=15 // pred_check_branch
          %206 = sbr.rel (%p204) target = $region24
        $region23: #{tpu_custom_call.1} parent=15 // pred_region
          %s207 = sand.u32 %s19, 1
          %s208 = scalar_lea.sflag [#allocation7], %s207
          %s209 = sand.u32 %s69, 1
          %s210 = smul.addr %s209, 256
          %s211 = scalar_lea.vmem [#allocation6], %s210
          %s212 = smul.u32 16, %s26
          %s213 = smul.u32 2, %s27
          %215 = vsyncadd %s208, 0
          %s216 = smul.addr %s212, 4
          %s217 = sadd.s32 %s213, %s216
          %s218 = smul.addr %s217, 8
          %s219 = scalar_lea.hbm %s1, %s218
          %s220 = sshll.u32 %s219, 4
          %s221 = int_to_ptr.hbm [resolvable:$true] %s220
          %s222 = sshll.u32 %s211, 4
          %s223 = int_to_ptr.vmem [resolvable:$true] %s222
          %228 = dma.hbm_to_vmem [thread:$0]  %s221, 4096, %s223, %s208, 512, 256, 16
        $region24: #{tpu_custom_call.1} parent=15 // pred_fallthru
          _
        // Predicated region
        $region25: #{tpu_custom_call.1} parent=15 // pred_check
          %p229 = pneg %p107
        $region26: #{tpu_custom_call.1} parent=15 // pred_check_branch
          %231 = sbr.rel (%p229) target = $region28
        $region27: #{tpu_custom_call.1} parent=15 // pred_region
          %s232 = sand.u32 %s19, 1
          %s233 = scalar_lea.sflag [#allocation7], %s232
          %s234 = sand.u32 %s97, 1
          %s235 = smul.addr %s234, 256
          %s236 = scalar_lea.vmem [#allocation8], %s235
          %s237 = smul.u32 16, %s26
          %s238 = smul.u32 2, %s27
          %240 = vsyncadd %s233, 0
          %s241 = smul.addr %s237, 4
          %s242 = sadd.s32 %s238, %s241
          %s243 = smul.addr %s242, 8
          %s244 = scalar_lea.hbm %s2, %s243
          %s245 = sshll.u32 %s244, 4
          %s246 = int_to_ptr.hbm [resolvable:$true] %s245
          %s247 = sshll.u32 %s236, 4
          %s248 = int_to_ptr.vmem [resolvable:$true] %s247
          %253 = dma.hbm_to_vmem [thread:$0]  %s246, 4096, %s248, %s233, 512, 256, 16
        $region28: #{tpu_custom_call.1} parent=15 // pred_fallthru
          _
        // Predicated region
        $region29: #{tpu_custom_call.1} parent=15 // pred_check
          %p254 = pneg %p133
        $region30: #{tpu_custom_call.1} parent=15 // pred_check_branch
          %256 = sbr.rel (%p254) target = $region32
        $region31: #{tpu_custom_call.1} parent=15 // pred_region
          %p257 = scmp.lt.s32.totalorder %s26, 1
          %s258 = scalar_select %p257, %s26, 1
          %s259 = scalar_lea.vmem %s3, %s258
        $region32: #{tpu_custom_call.1} parent=15 // pred_fallthru
          _
      $region16: #{tpu_custom_call.1} parent=5 // pred_fallthru
        _
      %p260 = scmp.le.s32.totalorder 1, %s19
      %p261 = scmp.lt.s32.totalorder %s19, 5
      %p262 = pnand %p260, %p261
      %p263 = pneg %p262
      // Predicated region
      $region33: #{tpu_custom_call.1} parent=5 // pred_check
        _
      $region34: #{tpu_custom_call.1} parent=5 // pred_check_branch
        %265 = sbr.rel (%p262) target = $region36
      $region35: #{tpu_custom_call.1} parent=5 // pred_region
        %s266 = ssub.s32 %s19, 1
        %s267 = sand.u32 %s44, 1
        %s268 = scalar_lea.sflag [#allocation4], %s267
        %s269 = sand.u32 %s44, 1
        %s270 = smul.addr %s269, 16
        %s271 = scalar_lea.vmem [#allocation3], %s270
        // Predicated region
        $region37: #{tpu_custom_call.1} parent=35 // pred_check
          %p272 = pneg %p57
        $region38: #{tpu_custom_call.1} parent=35 // pred_check_branch
          %274 = sbr.rel (%p272) target = $region40
        $region39: #{tpu_custom_call.1} parent=35 // pred_region
          %276 = dma.done %s268, 256
        $region40: #{tpu_custom_call.1} parent=35 // pred_fallthru
          _
        %s277 = sand.u32 %s24, 1
        %s278 = scalar_lea.sflag [#allocation7], %s277
        %s279 = sand.u32 %s72, 1
        %s280 = smul.addr %s279, 256
        %s281 = scalar_lea.vmem [#allocation6], %s280
        // Predicated region
        $region41: #{tpu_custom_call.1} parent=35 // pred_check
          %p282 = pneg %p85
        $region42: #{tpu_custom_call.1} parent=35 // pred_check_branch
          %284 = sbr.rel (%p282) target = $region44
        $region43: #{tpu_custom_call.1} parent=35 // pred_region
          %286 = dma.done %s278, 4096
        $region44: #{tpu_custom_call.1} parent=35 // pred_fallthru
          _
        %s287 = sand.u32 %s24, 1
        %s288 = scalar_lea.sflag [#allocation7], %s287
        %s289 = sand.u32 %s100, 1
        %s290 = smul.addr %s289, 256
        %s291 = scalar_lea.vmem [#allocation8], %s290
        // Predicated region
        $region45: #{tpu_custom_call.1} parent=35 // pred_check
          %p292 = pneg %p113
        $region46: #{tpu_custom_call.1} parent=35 // pred_check_branch
          %294 = sbr.rel (%p292) target = $region48
        $region47: #{tpu_custom_call.1} parent=35 // pred_region
          %296 = dma.done %s288, 4096
        $region48: #{tpu_custom_call.1} parent=35 // pred_fallthru
          _
        %s297 = sand.u32 %s44, 1
        %s298 = scalar_lea.sflag [#allocation4], %s297
        %s299 = sand.u32 %s44, 1
        %s300 = smul.addr %s299, 16
        %s301 = scalar_lea.vmem [#allocation3], %s300
        %p302 = pneg %p57
        %p303 = pneg %p54
        %s304 = sand.u32 %s24, 1
        %s305 = scalar_lea.sflag [#allocation7], %s304
        %s306 = sand.u32 %s72, 1
        %s307 = smul.addr %s306, 256
        %s308 = scalar_lea.vmem [#allocation6], %s307
        %p309 = pneg %p85
        %p310 = pneg %p82
        %s311 = sand.u32 %s24, 1
        %s312 = scalar_lea.sflag [#allocation7], %s311
        %s313 = sand.u32 %s100, 1
        %s314 = smul.addr %s313, 256
        %s315 = scalar_lea.vmem [#allocation8], %s314
        %p316 = pneg %p113
        %p317 = pneg %p110
        %p318 = scmp.lt.s32.totalorder %s28, 1
        %s319 = scalar_select %p318, %s28, 1
        %s320 = scalar_lea.vmem %s3, %s319
        %p321 = pneg %p139
        %p322 = pneg %p136
        %p323 = pneg %p165
        %p324 = pneg %p162
        %s325 = sand.u32 %s152, 1
        %s326 = scalar_lea.sflag [#allocation5], %s325
        %s327 = sand.u32 %s152, 1
        %s328 = smul.addr %s327, 8
        %s329 = scalar_lea.vmem [#allocation9], %s328
        %s330 = smul.u32 2, %s29
        %s331 = smul.u32 16, %s28
        %s332 = smul.u32 2, %s29
        %s333 = smul.u32 16, %s28
        %s334 = smul.u32 2, %s29
        %p335 = scmp.lt.s32.totalorder %s28, 1
        %s336 = scalar_select %p335, %s28, 1
        %s337 = scalar_lea.vmem %s3, %s336
        %p338 = scmp.eq.s32.totalorder %s29, 0
        // Predicated region
        $region49: #{tpu_custom_call.1} parent=35 // pred_check
          %p339 = pneg %p338
        $region50: #{tpu_custom_call.1} parent=35 // pred_check_branch
          %341 = sbr.rel (%p339) target = $region52
        $region51: #{tpu_custom_call.1} parent=35 // pred_region
          %342 = vst [vmem:[#allocation2] sm:$0xff] 0.0
        $region52: #{tpu_custom_call.1} parent=35 // pred_fallthru
          _
        %v343 = vld [vmem:[%s291] sm:$0xff]
        %v344 = vld [vmem:[%s291 + $0x8] sm:$0xff]
        %v345 = vld [vmem:[%s291 + $0x10] sm:$0xff]
        %v346 = vld [vmem:[%s291 + $0x18] sm:$0xff]
        %v347 = vld [vmem:[%s291 + $0x20] sm:$0xff]
        %v348 = vld [vmem:[%s291 + $0x28] sm:$0xff]
        %v349 = vld [vmem:[%s291 + $0x30] sm:$0xff]
        %v350 = vld [vmem:[%s291 + $0x38] sm:$0xff]
        %v351 = vld [vmem:[%s291 + $0x40] sm:$0xff]
        %v352 = vld [vmem:[%s291 + $0x48] sm:$0xff]
        %v353 = vld [vmem:[%s291 + $0x50] sm:$0xff]
        %v354 = vld [vmem:[%s291 + $0x58] sm:$0xff]
        %v355 = vld [vmem:[%s291 + $0x60] sm:$0xff]
        %v356 = vld [vmem:[%s291 + $0x68] sm:$0xff]
        %v357 = vld [vmem:[%s291 + $0x70] sm:$0xff]
        %v358 = vld [vmem:[%s291 + $0x78] sm:$0xff]
        %v359 = vld [vmem:[%s291 + $0x80] sm:$0xff]
        %v360 = vld [vmem:[%s291 + $0x88] sm:$0xff]
        %v361 = vld [vmem:[%s291 + $0x90] sm:$0xff]
        %v362 = vld [vmem:[%s291 + $0x98] sm:$0xff]
        %v363 = vld [vmem:[%s291 + $0xa0] sm:$0xff]
        %v364 = vld [vmem:[%s291 + $0xa8] sm:$0xff]
        %v365 = vld [vmem:[%s291 + $0xb0] sm:$0xff]
        %v366 = vld [vmem:[%s291 + $0xb8] sm:$0xff]
        %v367 = vld [vmem:[%s291 + $0xc0] sm:$0xff]
        %v368 = vld [vmem:[%s291 + $0xc8] sm:$0xff]
        %v369 = vld [vmem:[%s291 + $0xd0] sm:$0xff]
        %v370 = vld [vmem:[%s291 + $0xd8] sm:$0xff]
        %v371 = vld [vmem:[%s291 + $0xe0] sm:$0xff]
        %v372 = vld [vmem:[%s291 + $0xe8] sm:$0xff]
        %v373 = vld [vmem:[%s291 + $0xf0] sm:$0xff]
        %v374 = vld [vmem:[%s291 + $0xf8] sm:$0xff]
        %v375 = vxor.u32 %v343, 2147483648
        %v376 = vxor.u32 %v344, 2147483648
        %v377 = vxor.u32 %v345, 2147483648
        %v378 = vxor.u32 %v346, 2147483648
        %v379 = vxor.u32 %v347, 2147483648
        %v380 = vxor.u32 %v348, 2147483648
        %v381 = vxor.u32 %v349, 2147483648
        %v382 = vxor.u32 %v350, 2147483648
        %v383 = vxor.u32 %v351, 2147483648
        %v384 = vxor.u32 %v352, 2147483648
        %v385 = vxor.u32 %v353, 2147483648
        %v386 = vxor.u32 %v354, 2147483648
        %v387 = vxor.u32 %v355, 2147483648
        %v388 = vxor.u32 %v356, 2147483648
        %v389 = vxor.u32 %v357, 2147483648
        %v390 = vxor.u32 %v358, 2147483648
        %v391 = vxor.u32 %v359, 2147483648
        %v392 = vxor.u32 %v360, 2147483648
        %v393 = vxor.u32 %v361, 2147483648
        %v394 = vxor.u32 %v362, 2147483648
        %v395 = vxor.u32 %v363, 2147483648
        %v396 = vxor.u32 %v364, 2147483648
        %v397 = vxor.u32 %v365, 2147483648
        %v398 = vxor.u32 %v366, 2147483648
        %v399 = vxor.u32 %v367, 2147483648
        %v400 = vxor.u32 %v368, 2147483648
        %v401 = vxor.u32 %v369, 2147483648
        %v402 = vxor.u32 %v370, 2147483648
        %v403 = vxor.u32 %v371, 2147483648
        %v404 = vxor.u32 %v372, 2147483648
        %v405 = vxor.u32 %v373, 2147483648
        %v406 = vxor.u32 %v374, 2147483648
        %v407 = vmul.f32 %v375, 1.442695
        %v408 = vpow.pop %v407
        %v409 = vmul.f32 %v376, 1.442695
        %v410 = vpow.pop %v409
        %v411 = vmul.f32 %v377, 1.442695
        %v412 = vpow.pop %v411
        %v413 = vmul.f32 %v378, 1.442695
        %v414 = vpow.pop %v413
        %v415 = vmul.f32 %v379, 1.442695
        %v416 = vpow.pop %v415
        %v417 = vmul.f32 %v380, 1.442695
        %v418 = vpow.pop %v417
        %v419 = vmul.f32 %v381, 1.442695
        %v420 = vpow.pop %v419
        %v421 = vmul.f32 %v382, 1.442695
        %v422 = vpow.pop %v421
        %v423 = vmul.f32 %v383, 1.442695
        %v424 = vpow.pop %v423
        %v425 = vmul.f32 %v384, 1.442695
        %v426 = vpow.pop %v425
        %v427 = vmul.f32 %v385, 1.442695
        %v428 = vpow.pop %v427
        %v429 = vmul.f32 %v386, 1.442695
        %v430 = vpow.pop %v429
        %v431 = vmul.f32 %v387, 1.442695
        %v432 = vpow.pop %v431
        %v433 = vmul.f32 %v388, 1.442695
        %v434 = vpow.pop %v433
        %v435 = vmul.f32 %v389, 1.442695
        %v436 = vpow.pop %v435
        %v437 = vmul.f32 %v390, 1.442695
        %v438 = vpow.pop %v437
        %v439 = vmul.f32 %v391, 1.442695
        %v440 = vpow.pop %v439
        %v441 = vmul.f32 %v392, 1.442695
        %v442 = vpow.pop %v441
        %v443 = vmul.f32 %v393, 1.442695
        %v444 = vpow.pop %v443
        %v445 = vmul.f32 %v394, 1.442695
        %v446 = vpow.pop %v445
        %v447 = vmul.f32 %v395, 1.442695
        %v448 = vpow.pop %v447
        %v449 = vmul.f32 %v396, 1.442695
        %v450 = vpow.pop %v449
        %v451 = vmul.f32 %v397, 1.442695
        %v452 = vpow.pop %v451
        %v453 = vmul.f32 %v398, 1.442695
        %v454 = vpow.pop %v453
        %v455 = vmul.f32 %v399, 1.442695
        %v456 = vpow.pop %v455
        %v457 = vmul.f32 %v400, 1.442695
        %v458 = vpow.pop %v457
        %v459 = vmul.f32 %v401, 1.442695
        %v460 = vpow.pop %v459
        %v461 = vmul.f32 %v402, 1.442695
        %v462 = vpow.pop %v461
        %v463 = vmul.f32 %v403, 1.442695
        %v464 = vpow.pop %v463
        %v465 = vmul.f32 %v404, 1.442695
        %v466 = vpow.pop %v465
        %v467 = vmul.f32 %v405, 1.442695
        %v468 = vpow.pop %v467
        %v469 = vmul.f32 %v406, 1.442695
        %v470 = vpow.pop %v469
        %v471 = vadd.f32 %v408, 1.0
        %v472 = vadd.f32 %v410, 1.0
        %v473 = vadd.f32 %v412, 1.0
        %v474 = vadd.f32 %v414, 1.0
        %v475 = vadd.f32 %v416, 1.0
        %v476 = vadd.f32 %v418, 1.0
        %v477 = vadd.f32 %v420, 1.0
        %v478 = vadd.f32 %v422, 1.0
        %v479 = vadd.f32 %v424, 1.0
        %v480 = vadd.f32 %v426, 1.0
        %v481 = vadd.f32 %v428, 1.0
        %v482 = vadd.f32 %v430, 1.0
        %v483 = vadd.f32 %v432, 1.0
        %v484 = vadd.f32 %v434, 1.0
        %v485 = vadd.f32 %v436, 1.0
        %v486 = vadd.f32 %v438, 1.0
        %v487 = vadd.f32 %v440, 1.0
        %v488 = vadd.f32 %v442, 1.0
        %v489 = vadd.f32 %v444, 1.0
        %v490 = vadd.f32 %v446, 1.0
        %v491 = vadd.f32 %v448, 1.0
        %v492 = vadd.f32 %v450, 1.0
        %v493 = vadd.f32 %v452, 1.0
        %v494 = vadd.f32 %v454, 1.0
        %v495 = vadd.f32 %v456, 1.0
        %v496 = vadd.f32 %v458, 1.0
        %v497 = vadd.f32 %v460, 1.0
        %v498 = vadd.f32 %v462, 1.0
        %v499 = vadd.f32 %v464, 1.0
        %v500 = vadd.f32 %v466, 1.0
        %v501 = vadd.f32 %v468, 1.0
        %v502 = vadd.f32 %v470, 1.0
        %v503 = vrcp.pop %v471
        %v504 = vmul.f32 %v471, %v503
        %v505 = vsub.f32 1.0, %v504
        %v506 = vmul.f32 %v503, %v505
        %v507 = vadd.f32 %v503, %v506
        %vm508 = vweird.f32 %v471
        %vm509 = vweird.f32 %v503
        %vm510 = vmor %vm508, %vm509
        %v511 = vsel %vm510, %v503, %v507
        %v512 = vand.u32 2147483647, %v471
        %vm513 = vcmp.eq.f32.partialorder %v512, 8.507059e+37
        %v514 = vand.u32 %v471, 2147483648
        %v515 = vor.u32 1.1754944e-38, %v514
        %v516 = vsel %vm513, %v515, %v511
        %v517 = vmul.f32 1.0, %v516
        %v518 = vrcp.pop %v472
        %v519 = vmul.f32 %v472, %v518
        %v520 = vsub.f32 1.0, %v519
        %v521 = vmul.f32 %v518, %v520
        %v522 = vadd.f32 %v518, %v521
        %vm523 = vweird.f32 %v472
        %vm524 = vweird.f32 %v518
        %vm525 = vmor %vm523, %vm524
        %v526 = vsel %vm525, %v518, %v522
        %v527 = vand.u32 2147483647, %v472
        %vm528 = vcmp.eq.f32.partialorder %v527, 8.507059e+37
        %v529 = vand.u32 %v472, 2147483648
        %v530 = vor.u32 1.1754944e-38, %v529
        %v531 = vsel %vm528, %v530, %v526
        %v532 = vmul.f32 1.0, %v531
        %v533 = vrcp.pop %v473
        %v534 = vmul.f32 %v473, %v533
        %v535 = vsub.f32 1.0, %v534
        %v536 = vmul.f32 %v533, %v535
        %v537 = vadd.f32 %v533, %v536
        %vm538 = vweird.f32 %v473
        %vm539 = vweird.f32 %v533
        %vm540 = vmor %vm538, %vm539
        %v541 = vsel %vm540, %v533, %v537
        %v542 = vand.u32 2147483647, %v473
        %vm543 = vcmp.eq.f32.partialorder %v542, 8.507059e+37
        %v544 = vand.u32 %v473, 2147483648
        %v545 = vor.u32 1.1754944e-38, %v544
        %v546 = vsel %vm543, %v545, %v541
        %v547 = vmul.f32 1.0, %v546
        %v548 = vrcp.pop %v474
        %v549 = vmul.f32 %v474, %v548
        %v550 = vsub.f32 1.0, %v549
        %v551 = vmul.f32 %v548, %v550
        %v552 = vadd.f32 %v548, %v551
        %vm553 = vweird.f32 %v474
        %vm554 = vweird.f32 %v548
        %vm555 = vmor %vm553, %vm554
        %v556 = vsel %vm555, %v548, %v552
        %v557 = vand.u32 2147483647, %v474
        %vm558 = vcmp.eq.f32.partialorder %v557, 8.507059e+37
        %v559 = vand.u32 %v474, 2147483648
        %v560 = vor.u32 1.1754944e-38, %v559
        %v561 = vsel %vm558, %v560, %v556
        %v562 = vmul.f32 1.0, %v561
        %v563 = vrcp.pop %v475
        %v564 = vmul.f32 %v475, %v563
        %v565 = vsub.f32 1.0, %v564
        %v566 = vmul.f32 %v563, %v565
        %v567 = vadd.f32 %v563, %v566
        %vm568 = vweird.f32 %v475
        %vm569 = vweird.f32 %v563
        %vm570 = vmor %vm568, %vm569
        %v571 = vsel %vm570, %v563, %v567
        %v572 = vand.u32 2147483647, %v475
        %vm573 = vcmp.eq.f32.partialorder %v572, 8.507059e+37
        %v574 = vand.u32 %v475, 2147483648
        %v575 = vor.u32 1.1754944e-38, %v574
        %v576 = vsel %vm573, %v575, %v571
        %v577 = vmul.f32 1.0, %v576
        %v578 = vrcp.pop %v476
        %v579 = vmul.f32 %v476, %v578
        %v580 = vsub.f32 1.0, %v579
        %v581 = vmul.f32 %v578, %v580
        %v582 = vadd.f32 %v578, %v581
        %vm583 = vweird.f32 %v476
        %vm584 = vweird.f32 %v578
        %vm585 = vmor %vm583, %vm584
        %v586 = vsel %vm585, %v578, %v582
        %v587 = vand.u32 2147483647, %v476
        %vm588 = vcmp.eq.f32.partialorder %v587, 8.507059e+37
        %v589 = vand.u32 %v476, 2147483648
        %v590 = vor.u32 1.1754944e-38, %v589
        %v591 = vsel %vm588, %v590, %v586
        %v592 = vmul.f32 1.0, %v591
        %v593 = vrcp.pop %v477
        %v594 = vmul.f32 %v477, %v593
        %v595 = vsub.f32 1.0, %v594
        %v596 = vmul.f32 %v593, %v595
        %v597 = vadd.f32 %v593, %v596
        %vm598 = vweird.f32 %v477
        %vm599 = vweird.f32 %v593
        %vm600 = vmor %vm598, %vm599
        %v601 = vsel %vm600, %v593, %v597
        %v602 = vand.u32 2147483647, %v477
        %vm603 = vcmp.eq.f32.partialorder %v602, 8.507059e+37
        %v604 = vand.u32 %v477, 2147483648
        %v605 = vor.u32 1.1754944e-38, %v604
        %v606 = vsel %vm603, %v605, %v601
        %v607 = vmul.f32 1.0, %v606
        %v608 = vrcp.pop %v478
        %v609 = vmul.f32 %v478, %v608
        %v610 = vsub.f32 1.0, %v609
        %v611 = vmul.f32 %v608, %v610
        %v612 = vadd.f32 %v608, %v611
        %vm613 = vweird.f32 %v478
        %vm614 = vweird.f32 %v608
        %vm615 = vmor %vm613, %vm614
        %v616 = vsel %vm615, %v608, %v612
        %v617 = vand.u32 2147483647, %v478
        %vm618 = vcmp.eq.f32.partialorder %v617, 8.507059e+37
        %v619 = vand.u32 %v478, 2147483648
        %v620 = vor.u32 1.1754944e-38, %v619
        %v621 = vsel %vm618, %v620, %v616
        %v622 = vmul.f32 1.0, %v621
        %v623 = vrcp.pop %v479
        %v624 = vmul.f32 %v479, %v623
        %v625 = vsub.f32 1.0, %v624
        %v626 = vmul.f32 %v623, %v625
        %v627 = vadd.f32 %v623, %v626
        %vm628 = vweird.f32 %v479
        %vm629 = vweird.f32 %v623
        %vm630 = vmor %vm628, %vm629
        %v631 = vsel %vm630, %v623, %v627
        %v632 = vand.u32 2147483647, %v479
        %vm633 = vcmp.eq.f32.partialorder %v632, 8.507059e+37
        %v634 = vand.u32 %v479, 2147483648
        %v635 = vor.u32 1.1754944e-38, %v634
        %v636 = vsel %vm633, %v635, %v631
        %v637 = vmul.f32 1.0, %v636
        %v638 = vrcp.pop %v480
        %v639 = vmul.f32 %v480, %v638
        %v640 = vsub.f32 1.0, %v639
        %v641 = vmul.f32 %v638, %v640
        %v642 = vadd.f32 %v638, %v641
        %vm643 = vweird.f32 %v480
        %vm644 = vweird.f32 %v638
        %vm645 = vmor %vm643, %vm644
        %v646 = vsel %vm645, %v638, %v642
        %v647 = vand.u32 2147483647, %v480
        %vm648 = vcmp.eq.f32.partialorder %v647, 8.507059e+37
        %v649 = vand.u32 %v480, 2147483648
        %v650 = vor.u32 1.1754944e-38, %v649
        %v651 = vsel %vm648, %v650, %v646
        %v652 = vmul.f32 1.0, %v651
        %v653 = vrcp.pop %v481
        %v654 = vmul.f32 %v481, %v653
        %v655 = vsub.f32 1.0, %v654
        %v656 = vmul.f32 %v653, %v655
        %v657 = vadd.f32 %v653, %v656
        %vm658 = vweird.f32 %v481
        %vm659 = vweird.f32 %v653
        %vm660 = vmor %vm658, %vm659
        %v661 = vsel %vm660, %v653, %v657
        %v662 = vand.u32 2147483647, %v481
        %vm663 = vcmp.eq.f32.partialorder %v662, 8.507059e+37
        %v664 = vand.u32 %v481, 2147483648
        %v665 = vor.u32 1.1754944e-38, %v664
        %v666 = vsel %vm663, %v665, %v661
        %v667 = vmul.f32 1.0, %v666
        %v668 = vrcp.pop %v482
        %v669 = vmul.f32 %v482, %v668
        %v670 = vsub.f32 1.0, %v669
        %v671 = vmul.f32 %v668, %v670
        %v672 = vadd.f32 %v668, %v671
        %vm673 = vweird.f32 %v482
        %vm674 = vweird.f32 %v668
        %vm675 = vmor %vm673, %vm674
        %v676 = vsel %vm675, %v668, %v672
        %v677 = vand.u32 2147483647, %v482
        %vm678 = vcmp.eq.f32.partialorder %v677, 8.507059e+37
        %v679 = vand.u32 %v482, 2147483648
        %v680 = vor.u32 1.1754944e-38, %v679
        %v681 = vsel %vm678, %v680, %v676
        %v682 = vmul.f32 1.0, %v681
        %v683 = vrcp.pop %v483
        %v684 = vmul.f32 %v483, %v683
        %v685 = vsub.f32 1.0, %v684
        %v686 = vmul.f32 %v683, %v685
        %v687 = vadd.f32 %v683, %v686
        %vm688 = vweird.f32 %v483
        %vm689 = vweird.f32 %v683
        %vm690 = vmor %vm688, %vm689
        %v691 = vsel %vm690, %v683, %v687
        %v692 = vand.u32 2147483647, %v483
        %vm693 = vcmp.eq.f32.partialorder %v692, 8.507059e+37
        %v694 = vand.u32 %v483, 2147483648
        %v695 = vor.u32 1.1754944e-38, %v694
        %v696 = vsel %vm693, %v695, %v691
        %v697 = vmul.f32 1.0, %v696
        %v698 = vrcp.pop %v484
        %v699 = vmul.f32 %v484, %v698
        %v700 = vsub.f32 1.0, %v699
        %v701 = vmul.f32 %v698, %v700
        %v702 = vadd.f32 %v698, %v701
        %vm703 = vweird.f32 %v484
        %vm704 = vweird.f32 %v698
        %vm705 = vmor %vm703, %vm704
        %v706 = vsel %vm705, %v698, %v702
        %v707 = vand.u32 2147483647, %v484
        %vm708 = vcmp.eq.f32.partialorder %v707, 8.507059e+37
        %v709 = vand.u32 %v484, 2147483648
        %v710 = vor.u32 1.1754944e-38, %v709
        %v711 = vsel %vm708, %v710, %v706
        %v712 = vmul.f32 1.0, %v711
        %v713 = vrcp.pop %v485
        %v714 = vmul.f32 %v485, %v713
        %v715 = vsub.f32 1.0, %v714
        %v716 = vmul.f32 %v713, %v715
        %v717 = vadd.f32 %v713, %v716
        %vm718 = vweird.f32 %v485
        %vm719 = vweird.f32 %v713
        %vm720 = vmor %vm718, %vm719
        %v721 = vsel %vm720, %v713, %v717
        %v722 = vand.u32 2147483647, %v485
        %vm723 = vcmp.eq.f32.partialorder %v722, 8.507059e+37
        %v724 = vand.u32 %v485, 2147483648
        %v725 = vor.u32 1.1754944e-38, %v724
        %v726 = vsel %vm723, %v725, %v721
        %v727 = vmul.f32 1.0, %v726
        %v728 = vrcp.pop %v486
        %v729 = vmul.f32 %v486, %v728
        %v730 = vsub.f32 1.0, %v729
        %v731 = vmul.f32 %v728, %v730
        %v732 = vadd.f32 %v728, %v731
        %vm733 = vweird.f32 %v486
        %vm734 = vweird.f32 %v728
        %vm735 = vmor %vm733, %vm734
        %v736 = vsel %vm735, %v728, %v732
        %v737 = vand.u32 2147483647, %v486
        %vm738 = vcmp.eq.f32.partialorder %v737, 8.507059e+37
        %v739 = vand.u32 %v486, 2147483648
        %v740 = vor.u32 1.1754944e-38, %v739
        %v741 = vsel %vm738, %v740, %v736
        %v742 = vmul.f32 1.0, %v741
        %v743 = vrcp.pop %v487
        %v744 = vmul.f32 %v487, %v743
        %v745 = vsub.f32 1.0, %v744
        %v746 = vmul.f32 %v743, %v745
        %v747 = vadd.f32 %v743, %v746
        %vm748 = vweird.f32 %v487
        %vm749 = vweird.f32 %v743
        %vm750 = vmor %vm748, %vm749
        %v751 = vsel %vm750, %v743, %v747
        %v752 = vand.u32 2147483647, %v487
        %vm753 = vcmp.eq.f32.partialorder %v752, 8.507059e+37
        %v754 = vand.u32 %v487, 2147483648
        %v755 = vor.u32 1.1754944e-38, %v754
        %v756 = vsel %vm753, %v755, %v751
        %v757 = vmul.f32 1.0, %v756
        %v758 = vrcp.pop %v488
        %v759 = vmul.f32 %v488, %v758
        %v760 = vsub.f32 1.0, %v759
        %v761 = vmul.f32 %v758, %v760
        %v762 = vadd.f32 %v758, %v761
        %vm763 = vweird.f32 %v488
        %vm764 = vweird.f32 %v758
        %vm765 = vmor %vm763, %vm764
        %v766 = vsel %vm765, %v758, %v762
        %v767 = vand.u32 2147483647, %v488
        %vm768 = vcmp.eq.f32.partialorder %v767, 8.507059e+37
        %v769 = vand.u32 %v488, 2147483648
        %v770 = vor.u32 1.1754944e-38, %v769
        %v771 = vsel %vm768, %v770, %v766
        %v772 = vmul.f32 1.0, %v771
        %v773 = vrcp.pop %v489
        %v774 = vmul.f32 %v489, %v773
        %v775 = vsub.f32 1.0, %v774
        %v776 = vmul.f32 %v773, %v775
        %v777 = vadd.f32 %v773, %v776
        %vm778 = vweird.f32 %v489
        %vm779 = vweird.f32 %v773
        %vm780 = vmor %vm778, %vm779
        %v781 = vsel %vm780, %v773, %v777
        %v782 = vand.u32 2147483647, %v489
        %vm783 = vcmp.eq.f32.partialorder %v782, 8.507059e+37
        %v784 = vand.u32 %v489, 2147483648
        %v785 = vor.u32 1.1754944e-38, %v784
        %v786 = vsel %vm783, %v785, %v781
        %v787 = vmul.f32 1.0, %v786
        %v788 = vrcp.pop %v490
        %v789 = vmul.f32 %v490, %v788
        %v790 = vsub.f32 1.0, %v789
        %v791 = vmul.f32 %v788, %v790
        %v792 = vadd.f32 %v788, %v791
        %vm793 = vweird.f32 %v490
        %vm794 = vweird.f32 %v788
        %vm795 = vmor %vm793, %vm794
        %v796 = vsel %vm795, %v788, %v792
        %v797 = vand.u32 2147483647, %v490
        %vm798 = vcmp.eq.f32.partialorder %v797, 8.507059e+37
        %v799 = vand.u32 %v490, 2147483648
        %v800 = vor.u32 1.1754944e-38, %v799
        %v801 = vsel %vm798, %v800, %v796
        %v802 = vmul.f32 1.0, %v801
        %v803 = vrcp.pop %v491
        %v804 = vmul.f32 %v491, %v803
        %v805 = vsub.f32 1.0, %v804
        %v806 = vmul.f32 %v803, %v805
        %v807 = vadd.f32 %v803, %v806
        %vm808 = vweird.f32 %v491
        %vm809 = vweird.f32 %v803
        %vm810 = vmor %vm808, %vm809
        %v811 = vsel %vm810, %v803, %v807
        %v812 = vand.u32 2147483647, %v491
        %vm813 = vcmp.eq.f32.partialorder %v812, 8.507059e+37
        %v814 = vand.u32 %v491, 2147483648
        %v815 = vor.u32 1.1754944e-38, %v814
        %v816 = vsel %vm813, %v815, %v811
        %v817 = vmul.f32 1.0, %v816
        %v818 = vrcp.pop %v492
        %v819 = vmul.f32 %v492, %v818
        %v820 = vsub.f32 1.0, %v819
        %v821 = vmul.f32 %v818, %v820
        %v822 = vadd.f32 %v818, %v821
        %vm823 = vweird.f32 %v492
        %vm824 = vweird.f32 %v818
        %vm825 = vmor %vm823, %vm824
        %v826 = vsel %vm825, %v818, %v822
        %v827 = vand.u32 2147483647, %v492
        %vm828 = vcmp.eq.f32.partialorder %v827, 8.507059e+37
        %v829 = vand.u32 %v492, 2147483648
        %v830 = vor.u32 1.1754944e-38, %v829
        %v831 = vsel %vm828, %v830, %v826
        %v832 = vmul.f32 1.0, %v831
        %v833 = vrcp.pop %v493
        %v834 = vmul.f32 %v493, %v833
        %v835 = vsub.f32 1.0, %v834
        %v836 = vmul.f32 %v833, %v835
        %v837 = vadd.f32 %v833, %v836
        %vm838 = vweird.f32 %v493
        %vm839 = vweird.f32 %v833
        %vm840 = vmor %vm838, %vm839
        %v841 = vsel %vm840, %v833, %v837
        %v842 = vand.u32 2147483647, %v493
        %vm843 = vcmp.eq.f32.partialorder %v842, 8.507059e+37
        %v844 = vand.u32 %v493, 2147483648
        %v845 = vor.u32 1.1754944e-38, %v844
        %v846 = vsel %vm843, %v845, %v841
        %v847 = vmul.f32 1.0, %v846
        %v848 = vrcp.pop %v494
        %v849 = vmul.f32 %v494, %v848
        %v850 = vsub.f32 1.0, %v849
        %v851 = vmul.f32 %v848, %v850
        %v852 = vadd.f32 %v848, %v851
        %vm853 = vweird.f32 %v494
        %vm854 = vweird.f32 %v848
        %vm855 = vmor %vm853, %vm854
        %v856 = vsel %vm855, %v848, %v852
        %v857 = vand.u32 2147483647, %v494
        %vm858 = vcmp.eq.f32.partialorder %v857, 8.507059e+37
        %v859 = vand.u32 %v494, 2147483648
        %v860 = vor.u32 1.1754944e-38, %v859
        %v861 = vsel %vm858, %v860, %v856
        %v862 = vmul.f32 1.0, %v861
        %v863 = vrcp.pop %v495
        %v864 = vmul.f32 %v495, %v863
        %v865 = vsub.f32 1.0, %v864
        %v866 = vmul.f32 %v863, %v865
        %v867 = vadd.f32 %v863, %v866
        %vm868 = vweird.f32 %v495
        %vm869 = vweird.f32 %v863
        %vm870 = vmor %vm868, %vm869
        %v871 = vsel %vm870, %v863, %v867
        %v872 = vand.u32 2147483647, %v495
        %vm873 = vcmp.eq.f32.partialorder %v872, 8.507059e+37
        %v874 = vand.u32 %v495, 2147483648
        %v875 = vor.u32 1.1754944e-38, %v874
        %v876 = vsel %vm873, %v875, %v871
        %v877 = vmul.f32 1.0, %v876
        %v878 = vrcp.pop %v496
        %v879 = vmul.f32 %v496, %v878
        %v880 = vsub.f32 1.0, %v879
        %v881 = vmul.f32 %v878, %v880
        %v882 = vadd.f32 %v878, %v881
        %vm883 = vweird.f32 %v496
        %vm884 = vweird.f32 %v878
        %vm885 = vmor %vm883, %vm884
        %v886 = vsel %vm885, %v878, %v882
        %v887 = vand.u32 2147483647, %v496
        %vm888 = vcmp.eq.f32.partialorder %v887, 8.507059e+37
        %v889 = vand.u32 %v496, 2147483648
        %v890 = vor.u32 1.1754944e-38, %v889
        %v891 = vsel %vm888, %v890, %v886
        %v892 = vmul.f32 1.0, %v891
        %v893 = vrcp.pop %v497
        %v894 = vmul.f32 %v497, %v893
        %v895 = vsub.f32 1.0, %v894
        %v896 = vmul.f32 %v893, %v895
        %v897 = vadd.f32 %v893, %v896
        %vm898 = vweird.f32 %v497
        %vm899 = vweird.f32 %v893
        %vm900 = vmor %vm898, %vm899
        %v901 = vsel %vm900, %v893, %v897
        %v902 = vand.u32 2147483647, %v497
        %vm903 = vcmp.eq.f32.partialorder %v902, 8.507059e+37
        %v904 = vand.u32 %v497, 2147483648
        %v905 = vor.u32 1.1754944e-38, %v904
        %v906 = vsel %vm903, %v905, %v901
        %v907 = vmul.f32 1.0, %v906
        %v908 = vrcp.pop %v498
        %v909 = vmul.f32 %v498, %v908
        %v910 = vsub.f32 1.0, %v909
        %v911 = vmul.f32 %v908, %v910
        %v912 = vadd.f32 %v908, %v911
        %vm913 = vweird.f32 %v498
        %vm914 = vweird.f32 %v908
        %vm915 = vmor %vm913, %vm914
        %v916 = vsel %vm915, %v908, %v912
        %v917 = vand.u32 2147483647, %v498
        %vm918 = vcmp.eq.f32.partialorder %v917, 8.507059e+37
        %v919 = vand.u32 %v498, 2147483648
        %v920 = vor.u32 1.1754944e-38, %v919
        %v921 = vsel %vm918, %v920, %v916
        %v922 = vmul.f32 1.0, %v921
        %v923 = vrcp.pop %v499
        %v924 = vmul.f32 %v499, %v923
        %v925 = vsub.f32 1.0, %v924
        %v926 = vmul.f32 %v923, %v925
        %v927 = vadd.f32 %v923, %v926
        %vm928 = vweird.f32 %v499
        %vm929 = vweird.f32 %v923
        %vm930 = vmor %vm928, %vm929
        %v931 = vsel %vm930, %v923, %v927
        %v932 = vand.u32 2147483647, %v499
        %vm933 = vcmp.eq.f32.partialorder %v932, 8.507059e+37
        %v934 = vand.u32 %v499, 2147483648
        %v935 = vor.u32 1.1754944e-38, %v934
        %v936 = vsel %vm933, %v935, %v931
        %v937 = vmul.f32 1.0, %v936
        %v938 = vrcp.pop %v500
        %v939 = vmul.f32 %v500, %v938
        %v940 = vsub.f32 1.0, %v939
        %v941 = vmul.f32 %v938, %v940
        %v942 = vadd.f32 %v938, %v941
        %vm943 = vweird.f32 %v500
        %vm944 = vweird.f32 %v938
        %vm945 = vmor %vm943, %vm944
        %v946 = vsel %vm945, %v938, %v942
        %v947 = vand.u32 2147483647, %v500
        %vm948 = vcmp.eq.f32.partialorder %v947, 8.507059e+37
        %v949 = vand.u32 %v500, 2147483648
        %v950 = vor.u32 1.1754944e-38, %v949
        %v951 = vsel %vm948, %v950, %v946
        %v952 = vmul.f32 1.0, %v951
        %v953 = vrcp.pop %v501
        %v954 = vmul.f32 %v501, %v953
        %v955 = vsub.f32 1.0, %v954
        %v956 = vmul.f32 %v953, %v955
        %v957 = vadd.f32 %v953, %v956
        %vm958 = vweird.f32 %v501
        %vm959 = vweird.f32 %v953
        %vm960 = vmor %vm958, %vm959
        %v961 = vsel %vm960, %v953, %v957
        %v962 = vand.u32 2147483647, %v501
        %vm963 = vcmp.eq.f32.partialorder %v962, 8.507059e+37
        %v964 = vand.u32 %v501, 2147483648
        %v965 = vor.u32 1.1754944e-38, %v964
        %v966 = vsel %vm963, %v965, %v961
        %v967 = vmul.f32 1.0, %v966
        %v968 = vrcp.pop %v502
        %v969 = vmul.f32 %v502, %v968
        %v970 = vsub.f32 1.0, %v969
        %v971 = vmul.f32 %v968, %v970
        %v972 = vadd.f32 %v968, %v971
        %vm973 = vweird.f32 %v502
        %vm974 = vweird.f32 %v968
        %vm975 = vmor %vm973, %vm974
        %v976 = vsel %vm975, %v968, %v972
        %v977 = vand.u32 2147483647, %v502
        %vm978 = vcmp.eq.f32.partialorder %v977, 8.507059e+37
        %v979 = vand.u32 %v502, 2147483648
        %v980 = vor.u32 1.1754944e-38, %v979
        %v981 = vsel %vm978, %v980, %v976
        %v982 = vmul.f32 1.0, %v981
        %v983 = vmul.f32 %v517, 1.2
        %v984 = vmul.f32 %v532, 1.2
        %v985 = vmul.f32 %v547, 1.2
        %v986 = vmul.f32 %v562, 1.2
        %v987 = vmul.f32 %v577, 1.2
        %v988 = vmul.f32 %v592, 1.2
        %v989 = vmul.f32 %v607, 1.2
        %v990 = vmul.f32 %v622, 1.2
        %v991 = vmul.f32 %v637, 1.2
        %v992 = vmul.f32 %v652, 1.2
        %v993 = vmul.f32 %v667, 1.2
        %v994 = vmul.f32 %v682, 1.2
        %v995 = vmul.f32 %v697, 1.2
        %v996 = vmul.f32 %v712, 1.2
        %v997 = vmul.f32 %v727, 1.2
        %v998 = vmul.f32 %v742, 1.2
        %v999 = vmul.f32 %v757, 1.2
        %v1000 = vmul.f32 %v772, 1.2
        %v1001 = vmul.f32 %v787, 1.2
        %v1002 = vmul.f32 %v802, 1.2
        %v1003 = vmul.f32 %v817, 1.2
        %v1004 = vmul.f32 %v832, 1.2
        %v1005 = vmul.f32 %v847, 1.2
        %v1006 = vmul.f32 %v862, 1.2
        %v1007 = vmul.f32 %v877, 1.2
        %v1008 = vmul.f32 %v892, 1.2
        %v1009 = vmul.f32 %v907, 1.2
        %v1010 = vmul.f32 %v922, 1.2
        %v1011 = vmul.f32 %v937, 1.2
        %v1012 = vmul.f32 %v952, 1.2
        %v1013 = vmul.f32 %v967, 1.2
        %v1014 = vmul.f32 %v982, 1.2
        %v1015 = vadd.f32 %v983, -0.1
        %v1016 = vadd.f32 %v984, -0.1
        %v1017 = vadd.f32 %v985, -0.1
        %v1018 = vadd.f32 %v986, -0.1
        %v1019 = vadd.f32 %v987, -0.1
        %v1020 = vadd.f32 %v988, -0.1
        %v1021 = vadd.f32 %v989, -0.1
        %v1022 = vadd.f32 %v990, -0.1
        %v1023 = vadd.f32 %v991, -0.1
        %v1024 = vadd.f32 %v992, -0.1
        %v1025 = vadd.f32 %v993, -0.1
        %v1026 = vadd.f32 %v994, -0.1
        %v1027 = vadd.f32 %v995, -0.1
        %v1028 = vadd.f32 %v996, -0.1
        %v1029 = vadd.f32 %v997, -0.1
        %v1030 = vadd.f32 %v998, -0.1
        %v1031 = vadd.f32 %v999, -0.1
        %v1032 = vadd.f32 %v1000, -0.1
        %v1033 = vadd.f32 %v1001, -0.1
        %v1034 = vadd.f32 %v1002, -0.1
        %v1035 = vadd.f32 %v1003, -0.1
        %v1036 = vadd.f32 %v1004, -0.1
        %v1037 = vadd.f32 %v1005, -0.1
        %v1038 = vadd.f32 %v1006, -0.1
        %v1039 = vadd.f32 %v1007, -0.1
        %v1040 = vadd.f32 %v1008, -0.1
        %v1041 = vadd.f32 %v1009, -0.1
        %v1042 = vadd.f32 %v1010, -0.1
        %v1043 = vadd.f32 %v1011, -0.1
        %v1044 = vadd.f32 %v1012, -0.1
        %v1045 = vadd.f32 %v1013, -0.1
        %v1046 = vadd.f32 %v1014, -0.1
        %v1047 = vmax.f32 %v1015, 0.0
        %v1048 = vmax.f32 %v1016, 0.0
        %v1049 = vmax.f32 %v1017, 0.0
        %v1050 = vmax.f32 %v1018, 0.0
        %v1051 = vmax.f32 %v1019, 0.0
        %v1052 = vmax.f32 %v1020, 0.0
        %v1053 = vmax.f32 %v1021, 0.0
        %v1054 = vmax.f32 %v1022, 0.0
        %v1055 = vmax.f32 %v1023, 0.0
        %v1056 = vmax.f32 %v1024, 0.0
        %v1057 = vmax.f32 %v1025, 0.0
        %v1058 = vmax.f32 %v1026, 0.0
        %v1059 = vmax.f32 %v1027, 0.0
        %v1060 = vmax.f32 %v1028, 0.0
        %v1061 = vmax.f32 %v1029, 0.0
        %v1062 = vmax.f32 %v1030, 0.0
        %v1063 = vmax.f32 %v1031, 0.0
        %v1064 = vmax.f32 %v1032, 0.0
        %v1065 = vmax.f32 %v1033, 0.0
        %v1066 = vmax.f32 %v1034, 0.0
        %v1067 = vmax.f32 %v1035, 0.0
        %v1068 = vmax.f32 %v1036, 0.0
        %v1069 = vmax.f32 %v1037, 0.0
        %v1070 = vmax.f32 %v1038, 0.0
        %v1071 = vmax.f32 %v1039, 0.0
        %v1072 = vmax.f32 %v1040, 0.0
        %v1073 = vmax.f32 %v1041, 0.0
        %v1074 = vmax.f32 %v1042, 0.0
        %v1075 = vmax.f32 %v1043, 0.0
        %v1076 = vmax.f32 %v1044, 0.0
        %v1077 = vmax.f32 %v1045, 0.0
        %v1078 = vmax.f32 %v1046, 0.0
        %v1079 = vmin.f32 %v1047, 1.0
        %v1080 = vmin.f32 %v1048, 1.0
        %v1081 = vmin.f32 %v1049, 1.0
        %v1082 = vmin.f32 %v1050, 1.0
        %v1083 = vmin.f32 %v1051, 1.0
        %v1084 = vmin.f32 %v1052, 1.0
        %v1085 = vmin.f32 %v1053, 1.0
        %v1086 = vmin.f32 %v1054, 1.0
        %v1087 = vmin.f32 %v1055, 1.0
        %v1088 = vmin.f32 %v1056, 1.0
        %v1089 = vmin.f32 %v1057, 1.0
        %v1090 = vmin.f32 %v1058, 1.0
        %v1091 = vmin.f32 %v1059, 1.0
        %v1092 = vmin.f32 %v1060, 1.0
        %v1093 = vmin.f32 %v1061, 1.0
        %v1094 = vmin.f32 %v1062, 1.0
        %v1095 = vmin.f32 %v1063, 1.0
        %v1096 = vmin.f32 %v1064, 1.0
        %v1097 = vmin.f32 %v1065, 1.0
        %v1098 = vmin.f32 %v1066, 1.0
        %v1099 = vmin.f32 %v1067, 1.0
        %v1100 = vmin.f32 %v1068, 1.0
        %v1101 = vmin.f32 %v1069, 1.0
        %v1102 = vmin.f32 %v1070, 1.0
        %v1103 = vmin.f32 %v1071, 1.0
        %v1104 = vmin.f32 %v1072, 1.0
        %v1105 = vmin.f32 %v1073, 1.0
        %v1106 = vmin.f32 %v1074, 1.0
        %v1107 = vmin.f32 %v1075, 1.0
        %v1108 = vmin.f32 %v1076, 1.0
        %v1109 = vmin.f32 %v1077, 1.0
        %v1110 = vmin.f32 %v1078, 1.0
        %v1111 = vld [vmem:[%s281] sm:$0xff]
        %v1112 = vld [vmem:[%s281 + $0x8] sm:$0xff]
        %v1113 = vld [vmem:[%s281 + $0x10] sm:$0xff]
        %v1114 = vld [vmem:[%s281 + $0x18] sm:$0xff]
        %v1115 = vld [vmem:[%s281 + $0x20] sm:$0xff]
        %v1116 = vld [vmem:[%s281 + $0x28] sm:$0xff]
        %v1117 = vld [vmem:[%s281 + $0x30] sm:$0xff]
        %v1118 = vld [vmem:[%s281 + $0x38] sm:$0xff]
        %v1119 = vld [vmem:[%s281 + $0x40] sm:$0xff]
        %v1120 = vld [vmem:[%s281 + $0x48] sm:$0xff]
        %v1121 = vld [vmem:[%s281 + $0x50] sm:$0xff]
        %v1122 = vld [vmem:[%s281 + $0x58] sm:$0xff]
        %v1123 = vld [vmem:[%s281 + $0x60] sm:$0xff]
        %v1124 = vld [vmem:[%s281 + $0x68] sm:$0xff]
        %v1125 = vld [vmem:[%s281 + $0x70] sm:$0xff]
        %v1126 = vld [vmem:[%s281 + $0x78] sm:$0xff]
        %v1127 = vld [vmem:[%s281 + $0x80] sm:$0xff]
        %v1128 = vld [vmem:[%s281 + $0x88] sm:$0xff]
        %v1129 = vld [vmem:[%s281 + $0x90] sm:$0xff]
        %v1130 = vld [vmem:[%s281 + $0x98] sm:$0xff]
        %v1131 = vld [vmem:[%s281 + $0xa0] sm:$0xff]
        %v1132 = vld [vmem:[%s281 + $0xa8] sm:$0xff]
        %v1133 = vld [vmem:[%s281 + $0xb0] sm:$0xff]
        %v1134 = vld [vmem:[%s281 + $0xb8] sm:$0xff]
        %v1135 = vld [vmem:[%s281 + $0xc0] sm:$0xff]
        %v1136 = vld [vmem:[%s281 + $0xc8] sm:$0xff]
        %v1137 = vld [vmem:[%s281 + $0xd0] sm:$0xff]
        %v1138 = vld [vmem:[%s281 + $0xd8] sm:$0xff]
        %v1139 = vld [vmem:[%s281 + $0xe0] sm:$0xff]
        %v1140 = vld [vmem:[%s281 + $0xe8] sm:$0xff]
        %v1141 = vld [vmem:[%s281 + $0xf0] sm:$0xff]
        %v1142 = vld [vmem:[%s281 + $0xf8] sm:$0xff]
        %v1143 = vmul.f32 %v1111, %v1079
        %v1144 = vmul.f32 %v1112, %v1080
        %v1145 = vmul.f32 %v1113, %v1081
        %v1146 = vmul.f32 %v1114, %v1082
        %v1147 = vmul.f32 %v1115, %v1083
        %v1148 = vmul.f32 %v1116, %v1084
        %v1149 = vmul.f32 %v1117, %v1085
        %v1150 = vmul.f32 %v1118, %v1086
        %v1151 = vmul.f32 %v1119, %v1087
        %v1152 = vmul.f32 %v1120, %v1088
        %v1153 = vmul.f32 %v1121, %v1089
        %v1154 = vmul.f32 %v1122, %v1090
        %v1155 = vmul.f32 %v1123, %v1091
        %v1156 = vmul.f32 %v1124, %v1092
        %v1157 = vmul.f32 %v1125, %v1093
        %v1158 = vmul.f32 %v1126, %v1094
        %v1159 = vmul.f32 %v1127, %v1095
        %v1160 = vmul.f32 %v1128, %v1096
        %v1161 = vmul.f32 %v1129, %v1097
        %v1162 = vmul.f32 %v1130, %v1098
        %v1163 = vmul.f32 %v1131, %v1099
        %v1164 = vmul.f32 %v1132, %v1100
        %v1165 = vmul.f32 %v1133, %v1101
        %v1166 = vmul.f32 %v1134, %v1102
        %v1167 = vmul.f32 %v1135, %v1103
        %v1168 = vmul.f32 %v1136, %v1104
        %v1169 = vmul.f32 %v1137, %v1105
        %v1170 = vmul.f32 %v1138, %v1106
        %v1171 = vmul.f32 %v1139, %v1107
        %v1172 = vmul.f32 %v1140, %v1108
        %v1173 = vmul.f32 %v1141, %v1109
        %v1174 = vmul.f32 %v1142, %v1110
        %v1175 = vld [vmem:[%s271] sm:$0xff]
        %v1176 = vld [vmem:[%s271 + $0x8] sm:$0xff]
        %v1177 = vld [vmem:[#allocation2] sm:$0xff]
        %1178 = vmatpush.xpose.msra.mxu0 %v1173
        %1179 = vmatpush.xpose.msra.mxu0 %v1171
        %1180 = vmatpush.xpose.msra.mxu0 %v1169
        %1181 = vmatpush.xpose.msra.mxu0 %v1167
        %1182 = vmatpush.xpose.msra.mxu0 %v1165
        %1183 = vmatpush.xpose.msra.mxu0 %v1163
        %1184 = vmatpush.xpose.msra.mxu0 %v1161
        %1185 = vmatpush.xpose.msra.mxu0 %v1159
        %1186 = vmatpush.xpose.msra.mxu0 %v1157
        %1187 = vmatpush.xpose.msra.mxu0 %v1155
        %1188 = vmatpush.xpose.msra.mxu0 %v1153
        %1189 = vmatpush.xpose.msra.mxu0 %v1151
        %1190 = vmatpush.xpose.msra.mxu0 %v1149
        %1191 = vmatpush.xpose.msra.mxu0 %v1147
        %1192 = vmatpush.xpose.msra.mxu0 %v1145
        %1193 = vmatpush.xpose.msra.mxu0 %v1143
        %1194 = vmatmul.f32.gmra.mxu0 %v1175
        %v1195 = vpop.f32.mrf.mxu0
        %v1196 = vadd.f32 0.0, %v1195
        %1197 = vdwg.mxu0
        %1198 = vmatpush.xpose.msra.mxu0 %v1174
        %1199 = vmatpush.xpose.msra.mxu0 %v1172
        %1200 = vmatpush.xpose.msra.mxu0 %v1170
        %1201 = vmatpush.xpose.msra.mxu0 %v1168
        %1202 = vmatpush.xpose.msra.mxu0 %v1166
        %1203 = vmatpush.xpose.msra.mxu0 %v1164
        %1204 = vmatpush.xpose.msra.mxu0 %v1162
        %1205 = vmatpush.xpose.msra.mxu0 %v1160
        %1206 = vmatpush.xpose.msra.mxu0 %v1158
        %1207 = vmatpush.xpose.msra.mxu0 %v1156
        %1208 = vmatpush.xpose.msra.mxu0 %v1154
        %1209 = vmatpush.xpose.msra.mxu0 %v1152
        %1210 = vmatpush.xpose.msra.mxu0 %v1150
        %1211 = vmatpush.xpose.msra.mxu0 %v1148
        %1212 = vmatpush.xpose.msra.mxu0 %v1146
        %1213 = vmatpush.xpose.msra.mxu0 %v1144
        %1214 = vmatmul.f32.gmra.mxu0 %v1176
        %v1215 = vpop.f32.mrf.mxu0
        %v1216 = vadd.f32 %v1196, %v1215
        %1217 = vdwg.mxu0
        %v1218 = vadd.f32 %v1177, %v1216
        %1219 = vst [vmem:[#allocation2] sm:$0xff] %v1218
        %p1220 = scmp.eq.s32.totalorder %s29, 1
        // Predicated region
        $region53: #{tpu_custom_call.1} parent=35 // pred_check
          %p1221 = pneg %p1220
        $region54: #{tpu_custom_call.1} parent=35 // pred_check_branch
          %1223 = sbr.rel (%p1221) target = $region56
        $region55: #{tpu_custom_call.1} parent=35 // pred_region
          %v1224 = vld [vmem:[#allocation2] sm:$0xff]
          %v1225 = vld [vmem:[%s337] sm:$0x1]
          %v1227 = vperm.slane %v1225, 0
          %v1229 = vadd.f32 %v1224, %v1227
          %1230 = vst [vmem:[%s329] sm:$0xff] %v1229
        $region56: #{tpu_custom_call.1} parent=35 // pred_fallthru
          _
        %s1231 = sand.u32 %s152, 1
        %s1232 = scalar_lea.sflag [#allocation5], %s1231
        %s1233 = sand.u32 %s152, 1
        %s1234 = smul.addr %s1233, 8
        %s1235 = scalar_lea.vmem [#allocation9], %s1234
        // Predicated region
        $region57: #{tpu_custom_call.1} parent=35 // pred_check
          %p1236 = pneg %p162
        $region58: #{tpu_custom_call.1} parent=35 // pred_check_branch
          %1238 = sbr.rel (%p1236) target = $region60
        $region59: #{tpu_custom_call.1} parent=35 // pred_region
          %1240 = vsyncadd %s1232, 0
          %s1241 = smul.addr %s28, 8
          %s1242 = scalar_lea.hbm %s4, %s1241
          %s1244 = sshll.u32 %s1235, 4
          %s1245 = int_to_ptr.vmem [resolvable:$true] %s1244
          %s1246 = sshll.u32 %s1242, 4
          %s1247 = int_to_ptr.hbm [resolvable:$true] %s1246
          %1249 = dma.vmem_to_hbm [thread:$0]  %s1245, 128, %s1247, %s1232
        $region60: #{tpu_custom_call.1} parent=35 // pred_fallthru
          _
      $region36: #{tpu_custom_call.1} parent=5 // pred_fallthru
        _
      %p1250 = scmp.le.s32.totalorder 2, %s19
      // Predicated region
      $region61: #{tpu_custom_call.1} parent=5 // pred_check
        %p1251 = pneg %p1250
      $region62: #{tpu_custom_call.1} parent=5 // pred_check_branch
        %1253 = sbr.rel (%p1251) target = $region64
      $region63: #{tpu_custom_call.1} parent=5 // pred_region
        %s1254 = ssub.s32 %s19, 2
        // Predicated region
        $region65: #{tpu_custom_call.1} parent=63 // pred_check
          %p1255 = pneg %p168
        $region66: #{tpu_custom_call.1} parent=63 // pred_check_branch
          %1257 = sbr.rel (%p1255) target = $region68
        $region67: #{tpu_custom_call.1} parent=63 // pred_region
          %s1258 = sand.u32 %s153, 1
          %s1259 = scalar_lea.sflag [#allocation5], %s1258
          %s1260 = sand.u32 %s153, 1
          %s1261 = smul.addr %s1260, 8
          %s1262 = scalar_lea.vmem [#allocation9], %s1261
          %1264 = dma.done %s1259, 128
        $region68: #{tpu_custom_call.1} parent=63 // pred_fallthru
          _
      $region64: #{tpu_custom_call.1} parent=5 // pred_fallthru
        _
    $region6: #{tpu_custom_call.1} parent=1 // loop_footer
      %s23 = sadd.s32 1, %s19
    $region7: #{tpu_custom_call.1} parent=1 // loop_footer_branch
      %18 = sbr.rel target = $region3
    $region8: #{tpu_custom_call.1} parent=1 // loop_exit
      _
    %1265 = vsyncpa [#allocation4], 1
    %s1266 = scalar_lea.sflag [#allocation4], 1
    %1267 = vsyncpa %s1266, 1
    %1268 = vsyncpa [#allocation7], 1
    %s1269 = scalar_lea.sflag [#allocation7], 1
    %1270 = vsyncpa %s1269, 1
    %1271 = vsyncpa [#allocation5], 1
    %s1272 = scalar_lea.sflag [#allocation5], 1
    %1273 = vsyncpa %s1272, 1

</llo_original>
